<compile_context>
chip_gen: v5e
topology: v5e:2x2
jax: 0.10.0
libtpu: 0.0.40
codegen_flags: <defaults>
</compile_context>

<pallas_src>
import jax
import jax.numpy as jnp
from jax.experimental import pallas as pl
from jax.experimental.pallas import tpu as pltpu


def _round_up(n, m):
    return ((n + m - 1) // m) * m


def _decoder_kernel(x_ref,
                    w1_ref, b1_ref,
                    w2_ref, b2_ref,
                    wh_ref, bh_ref,
                    out_ref):
    mxu_dt = w1_ref.dtype   # MXU input dtype (bf16 recommended on v5e/v6e/v7x)
    act_dt = b1_ref.dtype   # bias-add / tanh dtype (f32 default; bf16 on v6e/v7x)
    # Hidden layer 1: tanh(x @ W1 + b1), f32 MXU accumulation.
    h = jnp.tanh(
        jnp.dot(x_ref[...], w1_ref[...],
                preferred_element_type=jnp.float32).astype(act_dt)
        + b1_ref[...]
    )
    # Hidden layer 2: tanh(h @ W2 + b2).
    h = jnp.tanh(
        jnp.dot(h.astype(mxu_dt), w2_ref[...],
                preferred_element_type=jnp.float32).astype(act_dt)
        + b2_ref[...]
    )
    # Fused heads: one matmul produces [mu | log_var | zero-pad] in a single
    # lane-dense (multiple-of-128 wide) slab -> unmasked lane-dense stores.
    # Head accumulation and bias add stay f32 for log_var precision.
    out_ref[...] = (
        jnp.dot(h.astype(mxu_dt), wh_ref[...], preferred_element_type=jnp.float32)
        + bh_ref[...]
    ).astype(out_ref.dtype)


def prepare_decoder_params(params, *, compute_dtype=jnp.bfloat16,
                           activation_dtype=jnp.float32):
    """One-time (per set of weights) fusion + casting, hoisted off the hot path.

    * mu / log_var heads fused into one weight; fused lane dim zero-padded to a
      multiple of 128 so the kernel's output store is unmasked and lane-dense.
    * weights pre-cast to `compute_dtype` (bf16 recommended on every TPU
      generation: full MXU throughput, half the weight/activation DMA bytes;
      accumulation stays f32 inside the kernel).
    * hidden-layer biases pre-cast to `activation_dtype` (f32 default; bf16 on
      v6e/v7x moves the bias-add/tanh path to bf16 and drops two cast passes;
      keep f32 on v5e, whose EUP has no native bf16).
    """
    out_dim = params["w3"].shape[1]
    fused = 2 * out_dim
    padded = max(128, _round_up(fused, 128))
    w_head = jnp.concatenate([params["w3"], params["w4"]], axis=1)
    b_head = jnp.concatenate([params["b3"], params["b4"]], axis=1)
    if padded != fused:
        w_head = jnp.pad(w_head, ((0, 0), (0, padded - fused)))
        b_head = jnp.pad(b_head, ((0, 0), (0, padded - fused)))
    return {
        "w1": params["w1"].astype(compute_dtype),
        "b1": params["b1"].astype(activation_dtype),
        "w2": params["w2"].astype(compute_dtype),
        "b2": params["b2"].astype(activation_dtype),
        "wh": w_head.astype(compute_dtype),
        "bh": b_head.astype(jnp.float32),   # head epilogue stays f32
        "out_dim": out_dim,
        "fused": fused,
    }


def categorical_decoder_forward(x, prep, *, block_batch=1024,
                                out_dtype=jnp.float32):
    """x: (B, latent_dim). prep: output of prepare_decoder_params.

    Returns (mu, log_var), each (B, output_dim) in `out_dtype`.
    """
    B, latent = x.shape
    w1, b1 = prep["w1"], prep["b1"]
    w2, b2 = prep["w2"], prep["b2"]
    wh, bh = prep["wh"], prep["bh"]
    h1, h2 = w1.shape[1], w2.shape[1]
    padded = wh.shape[1]
    out_dim, fused = prep["out_dim"], prep["fused"]
    compute_dtype = w1.dtype

    # --- Batch tiling.  Large tiles amortize the ~0.35 us per-grid-step
    # pipeline overhead (this kernel is step-overhead bound at MLP sizes).
    # Keep the step count even when >1 so v7x's two TensorCores split the
    # "parallel" batch axis evenly (neutral on v5e/v6e).
    steps = -(-B // block_batch)
    if steps > 1 and steps % 2 == 1:
        steps += 1
    tb = _round_up(-(-B // steps), 8)
    bp = steps * tb

    x_in = x.astype(compute_dtype)
    if bp != B:
        x_in = jnp.pad(x_in, ((0, bp - B), (0, 0)))
    # TODO(synk): with tiny latent dims the (tb, latent) x tile is lane-padded
    # in HBM; a lane-dense repack (e.g. (bp//16, 16*latent)) would shrink the
    # input DMA further.

    def resident(arr):
        # Whole-array block with a constant block index -> DMA'd once and kept
        # VMEM-resident across the batch loop (weights & biases).
        return pl.BlockSpec(arr.shape, lambda i: (0, 0))

    w_itm = jnp.dtype(compute_dtype).itemsize
    cost = pl.CostEstimate(
        flops=2 * bp * (latent * h1 + h1 * h2 + h2 * padded),
        transcendentals=bp * (h1 + h2),
        bytes_accessed=(bp * latent * w_itm                                # x
                        + (latent * h1 + h1 * h2 + h2 * padded) * w_itm   # W
                        + b1.size * b1.dtype.itemsize
                        + b2.size * b2.dtype.itemsize
                        + bh.size * 4
                        + bp * padded * jnp.dtype(out_dtype).itemsize),   # out
    )

    out = pl.pallas_call(
        _decoder_kernel,
        out_shape=jax.ShapeDtypeStruct((bp, padded), out_dtype),
        grid=(steps,),
        in_specs=[
            pl.BlockSpec((tb, latent), lambda i: (i, 0)),  # streamed batch tile
            resident(w1), resident(b1),
            resident(w2), resident(b2),
            resident(wh), resident(bh),
        ],
        out_specs=pl.BlockSpec((tb, padded), lambda i: (i, 0)),
        compiler_params=pltpu.CompilerParams(
            dimension_semantics=("parallel",)),
        cost_estimate=cost,
    )(x_in, w1, b1, w2, b2, wh, bh)

    # Slice off batch padding and split the fused head: [mu | log_var | pad].
    mu = out[:B, :out_dim]
    log_var = out[:B, out_dim:fused]
    return mu, log_var


def init_params(key, latent_dim, output_dim, hidden_sizes=(256, 128)):
    """Deterministic synthetic init mirroring torch.nn.Linear shapes.

    Layer sizes: [latent_dim, hidden_sizes[-1], ..., hidden_sizes[0], output_dim]
    (reversed hidden list, matching the PyTorch module's list manipulation).
    """
    sizes = [output_dim] + list(hidden_sizes)          # [out, 256, 128]
    sizes.append(latent_dim)                           # [out, 256, 128, latent]
    sizes = sizes[::-1]                                # [latent, 128, 256, out]

    params = {}
    keys = jax.random.split(key, 8)
    layer_dims = [
        (sizes[0], sizes[1]),  # L1
        (sizes[1], sizes[2]),  # L2
        (sizes[2], sizes[3]),  # L3 (mu head)
        (sizes[2], sizes[3]),  # L4 (log_var head)
    ]
    for i, (fan_in, fan_out) in enumerate(layer_dims, start=1):
        bound = 1.0 / jnp.sqrt(fan_in)
        # stored as (in, out) so the kernel does x @ W
        params[f"w{i}"] = jax.random.uniform(
            keys[2 * (i - 1)], (fan_in, fan_out), jnp.float32, -bound, bound
        )
        params[f"b{i}"] = jax.random.uniform(
            keys[2 * (i - 1) + 1], (1, fan_out), jnp.float32, -bound, bound
        )
    return params


def reference_forward(x, params):
    h = jnp.tanh(x @ params["w1"] + params["b1"])
    h = jnp.tanh(h @ params["w2"] + params["b2"])
    mu = h @ params["w3"] + params["b3"]
    log_var = h @ params["w4"] + params["b4"]
    return mu, log_var


if __name__ == "__main__":
    latent_dim = 8
    output_dim = 16
    batch = 8

    key = jax.random.PRNGKey(0)
    k_x, k_p = jax.random.split(key)

    x = jax.random.normal(k_x, (batch, latent_dim), dtype=jnp.float32)
    params = init_params(k_p, latent_dim, output_dim)

    # --- Strict-precision path: f32 weights / f32 activations, single grid step.
    prep_f32 = prepare_decoder_params(
        params, compute_dtype=jnp.float32, activation_dtype=jnp.float32)
    mu, log_var = categorical_decoder_forward(x, prep_f32)
    jax.block_until_ready((mu, log_var))

    mu_ref, log_var_ref = reference_forward(x, params)
    assert mu.shape == (batch, output_dim) and log_var.shape == (batch, output_dim)
    assert jnp.allclose(mu, mu_ref, atol=1e-5, rtol=1e-5)
    assert jnp.allclose(log_var, log_var_ref, atol=1e-5, rtol=1e-5)

    # --- Fast path: bf16 MXU inputs + bf16 activation path + bf16 output,
    #     non-divisible batch so the pipelined grid has multiple (even) steps
    #     (B=300, block_batch=128 -> 4 steps of tb=80, padded batch 320).
    prep_bf16 = prepare_decoder_params(
        params, compute_dtype=jnp.bfloat16, activation_dtype=jnp.bfloat16)
    xb = jax.random.normal(jax.random.PRNGKey(1), (300, latent_dim),
                           dtype=jnp.float32)
    mu_b, lv_b = categorical_decoder_forward(
        xb, prep_bf16, block_batch=128, out_dtype=jnp.bfloat16)
    jax.block_until_ready((mu_b, lv_b))

    mu_rb, lv_rb = reference_forward(xb, params)
    assert mu_b.shape == (300, output_dim) and lv_b.shape == (300, output_dim)
    assert jnp.allclose(mu_b.astype(jnp.float32), mu_rb, atol=5e-2, rtol=5e-2)
    assert jnp.allclose(lv_b.astype(jnp.float32), lv_rb, atol=5e-2, rtol=5e-2)

    print("KERNEL_OK")
</pallas_src>

<mosaic_0001>
module attributes {stable_mosaic.version = 11 : i64} {
  func.func @_decoder_kernel(%arg0: i32, %arg1: memref<8x8xf32, #tpu.memory_space<vmem>>, %arg2: memref<8x128xf32, #tpu.memory_space<vmem>>, %arg3: memref<1x128xf32, #tpu.memory_space<vmem>>, %arg4: memref<128x256xf32, #tpu.memory_space<vmem>>, %arg5: memref<1x256xf32, #tpu.memory_space<vmem>>, %arg6: memref<256x128xf32, #tpu.memory_space<vmem>>, %arg7: memref<1x128xf32, #tpu.memory_space<vmem>>, %arg8: memref<8x128xf32, #tpu.memory_space<vmem>>) attributes {dimension_semantics = [#tpu.dimension_semantics<parallel>], iteration_bounds = array<i64: 1>, scalar_prefetch = 0 : i64, scratch_operands = 0 : i64, tpu.core_type = #tpu.core_type<tc>, window_params = [{transform_indices = @transform_0, window_bounds = array<i64: 8, 8>}, {pipeline_mode = #tpu.pipeline_mode<synchronous>, transform_indices = @transform_1, window_bounds = array<i64: 8, 128>}, {pipeline_mode = #tpu.pipeline_mode<synchronous>, transform_indices = @transform_2, window_bounds = array<i64: 1, 128>}, {pipeline_mode = #tpu.pipeline_mode<synchronous>, transform_indices = @transform_3, window_bounds = array<i64: 128, 256>}, {pipeline_mode = #tpu.pipeline_mode<synchronous>, transform_indices = @transform_4, window_bounds = array<i64: 1, 256>}, {pipeline_mode = #tpu.pipeline_mode<synchronous>, transform_indices = @transform_5, window_bounds = array<i64: 256, 128>}, {pipeline_mode = #tpu.pipeline_mode<synchronous>, transform_indices = @transform_6, window_bounds = array<i64: 1, 128>}, {transform_indices = @transform_7, window_bounds = array<i64: 8, 128>}]} {
    %c0 = arith.constant 0 : index
    %c0_0 = arith.constant 0 : index
    %0 = vector.load %arg1[%c0, %c0_0] : memref<8x8xf32, #tpu.memory_space<vmem>>, vector<8x8xf32>
    %c0_1 = arith.constant 0 : index
    %c0_2 = arith.constant 0 : index
    %1 = vector.load %arg2[%c0_1, %c0_2] : memref<8x128xf32, #tpu.memory_space<vmem>>, vector<8x128xf32>
    %cst = arith.constant dense<0.000000e+00> : vector<8x128xf32>
    %2 = tpu.matmul %0, %1, %cst {dimension_numbers = #tpu.dot_dimension_numbers<[1], [0], [0], [1], [0, 0, 1, 1], [], []>} : vector<8x8xf32>, vector<8x128xf32>, vector<8x128xf32> -> vector<8x128xf32>
    %c0_3 = arith.constant 0 : index
    %c0_4 = arith.constant 0 : index
    %3 = vector.load %arg3[%c0_3, %c0_4] : memref<1x128xf32, #tpu.memory_space<vmem>>, vector<1x128xf32>
    %4 = vector.broadcast %3 : vector<1x128xf32> to vector<8x128xf32>
    %5 = arith.addf %2, %4 : vector<8x128xf32>
    %6 = math.tanh %5 : vector<8x128xf32>
    %c0_5 = arith.constant 0 : index
    %c0_6 = arith.constant 0 : index
    %7 = vector.load %arg4[%c0_5, %c0_6] : memref<128x256xf32, #tpu.memory_space<vmem>>, vector<128x256xf32>
    %cst_7 = arith.constant dense<0.000000e+00> : vector<8x256xf32>
    %8 = tpu.matmul %6, %7, %cst_7 {dimension_numbers = #tpu.dot_dimension_numbers<[1], [0], [0], [1], [0, 0, 1, 1], [], []>} : vector<8x128xf32>, vector<128x256xf32>, vector<8x256xf32> -> vector<8x256xf32>
    %c0_8 = arith.constant 0 : index
    %c0_9 = arith.constant 0 : index
    %9 = vector.load %arg5[%c0_8, %c0_9] : memref<1x256xf32, #tpu.memory_space<vmem>>, vector<1x256xf32>
    %10 = vector.broadcast %9 : vector<1x256xf32> to vector<8x256xf32>
    %11 = arith.addf %8, %10 : vector<8x256xf32>
    %12 = math.tanh %11 : vector<8x256xf32>
    %c0_10 = arith.constant 0 : index
    %c0_11 = arith.constant 0 : index
    %13 = vector.load %arg6[%c0_10, %c0_11] : memref<256x128xf32, #tpu.memory_space<vmem>>, vector<256x128xf32>
    %cst_12 = arith.constant dense<0.000000e+00> : vector<8x128xf32>
    %14 = tpu.matmul %12, %13, %cst_12 {dimension_numbers = #tpu.dot_dimension_numbers<[1], [0], [0], [1], [0, 0, 1, 1], [], []>} : vector<8x256xf32>, vector<256x128xf32>, vector<8x128xf32> -> vector<8x128xf32>
    %c0_13 = arith.constant 0 : index
    %c0_14 = arith.constant 0 : index
    %15 = vector.load %arg7[%c0_13, %c0_14] : memref<1x128xf32, #tpu.memory_space<vmem>>, vector<1x128xf32>
    %16 = vector.broadcast %15 : vector<1x128xf32> to vector<8x128xf32>
    %17 = arith.addf %14, %16 : vector<8x128xf32>
    %c0_15 = arith.constant 0 : index
    %c0_16 = arith.constant 0 : index
    %18 = vector.load %arg8[%c0_15, %c0_16] : memref<8x128xf32, #tpu.memory_space<vmem>>, vector<8x128xf32>
    tpu.vector_store %arg8[%c0_15, %c0_16], %17 {strides = array<i32>} : memref<8x128xf32, #tpu.memory_space<vmem>>, vector<8x128xf32>,
    return
  }
  func.func @transform_0(%arg0: i32) -> (i32, i32) {
    %c0_i32 = arith.constant 0 : i32
    %c0_i32_0 = arith.constant 0 : i32
    return %arg0, %c0_i32 : i32, i32
  }
  func.func @transform_1(%arg0: i32) -> (i32, i32) {
    %c0_i32 = arith.constant 0 : i32
    %c0_i32_0 = arith.constant 0 : i32
    %c0_i32_1 = arith.constant 0 : i32
    return %c0_i32, %c0_i32_0 : i32, i32
  }
  func.func @transform_2(%arg0: i32) -> (i32, i32) {
    %c0_i32 = arith.constant 0 : i32
    %c0_i32_0 = arith.constant 0 : i32
    %c0_i32_1 = arith.constant 0 : i32
    return %c0_i32, %c0_i32_0 : i32, i32
  }
  func.func @transform_3(%arg0: i32) -> (i32, i32) {
    %c0_i32 = arith.constant 0 : i32
    %c0_i32_0 = arith.constant 0 : i32
    %c0_i32_1 = arith.constant 0 : i32
    return %c0_i32, %c0_i32_0 : i32, i32
  }
  func.func @transform_4(%arg0: i32) -> (i32, i32) {
    %c0_i32 = arith.constant 0 : i32
    %c0_i32_0 = arith.constant 0 : i32
    %c0_i32_1 = arith.constant 0 : i32
    return %c0_i32, %c0_i32_0 : i32, i32
  }
  func.func @transform_5(%arg0: i32) -> (i32, i32) {
    %c0_i32 = arith.constant 0 : i32
    %c0_i32_0 = arith.constant 0 : i32
    %c0_i32_1 = arith.constant 0 : i32
    return %c0_i32, %c0_i32_0 : i32, i32
  }
  func.func @transform_6(%arg0: i32) -> (i32, i32) {
    %c0_i32 = arith.constant 0 : i32
    %c0_i32_0 = arith.constant 0 : i32
    %c0_i32_1 = arith.constant 0 : i32
    return %c0_i32, %c0_i32_0 : i32, i32
  }
  func.func @transform_7(%arg0: i32) -> (i32, i32) {
    %c0_i32 = arith.constant 0 : i32
    %c0_i32_0 = arith.constant 0 : i32
    return %arg0, %c0_i32 : i32, i32
  }
}

</mosaic_0001>

<llo_original>
// kernel: tpu_custom_call.1
$region0: #{tpu_custom_call.1}
  #allocation0 [shape = 'u32[]', space=smem, size = 0x4, offset = 0x4, fixed_abs, tag = 'smem constant byte address 0x4 - core index']
  #allocation1 [shape = 'u32[72,128]{1,0:T(1,128)}', space=vmem, size = 0x9000, scoped, tag = 'internal scratch']
  %s0 = inlined_call_operand.hbm [shape: f32[8,8], index: 0, kind: input, shape index: {}]
  %s1 = inlined_call_operand.hbm [shape: f32[8,128], index: 1, kind: input, shape index: {}]
  %s2 = inlined_call_operand.vmem [shape: f32[1,128], index: 2, kind: input, shape index: {}]
  %s3 = inlined_call_operand.hbm [shape: f32[128,256], index: 3, kind: input, shape index: {}]
  %s4 = inlined_call_operand.vmem [shape: f32[1,256], index: 4, kind: input, shape index: {}]
  %s5 = inlined_call_operand.hbm [shape: f32[256,128], index: 5, kind: input, shape index: {}]
  %s6 = inlined_call_operand.vmem [shape: f32[1,128], index: 6, kind: input, shape index: {}]
  %s7 = inlined_call_operand.hbm [shape: f32[8,128], index: 7, kind: output, shape index: {}]
  %s8 = sld [smem:[#allocation0]]
  $region54: #{tpu_custom_call.1} parent=0
    _
  %s10 = ssub.s32 1, %s8
  %s11 = scalar_select 0, %s10, %s8
  $region1: #{tpu_custom_call.1} parent=0
    #allocation2 [shape = 'u8[4096]{0}', space=vmem, size = 0x1000, scoped, tag = 'input window, operand 0, single buffered']
    #allocation3 [shape = 's32[1]{0}', space=sflag, size = 0x4, scoped, tag = 'scoped memory for tpu_custom_call.1']
    #allocation4 [shape = 's32[1]{0}', space=sflag, size = 0x4, scoped, tag = 'scoped memory for tpu_custom_call.1']
    #allocation5 [shape = 'u8[4096]{0}', space=vmem, size = 0x1000, scoped, tag = 'input window, operand 1, single buffered']
    #allocation6 [shape = 's32[1]{0}', space=sflag, size = 0x4, scoped, tag = 'scoped memory for tpu_custom_call.1']
    #allocation7 [shape = 'u8[131072]{0}', space=vmem, size = 0x20000, scoped, tag = 'input window, operand 3, single buffered']
    #allocation8 [shape = 'u8[131072]{0}', space=vmem, size = 0x20000, scoped, tag = 'input window, operand 5, single buffered']
    #allocation9 [shape = 's32[1]{0}', space=sflag, size = 0x4, scoped, tag = 'scoped memory for tpu_custom_call.1']
    #allocation10 [shape = 'u8[4096]{0}', space=vmem, size = 0x1000, scoped, tag = 'output window, operand 0, single buffered']
    %12 = vsyncpa [#allocation3], 0
    %13 = vsyncpa [#allocation6], 0
    %14 = vsyncpa [#allocation9], 0
    %15 = vsyncpa [#allocation4], 0
    // Predicated region
    $region2: #{tpu_custom_call.1} parent=1 // pred_check
      _
    $region3: #{tpu_custom_call.1} parent=1 // pred_check_branch
      %17 = sbr.rel (0) target = $region5
    $region4: #{tpu_custom_call.1} parent=1 // pred_region
      %19 = vsyncadd [#allocation3], 0
      %s21 = sshll.u32 %s0, 4
      %s22 = int_to_ptr.hbm [resolvable:$true] %s21
      %s23 = sshll.u32 [#allocation2], 4
      %s24 = int_to_ptr.vmem [resolvable:$true] %s23
      %26 = dma.hbm_to_vmem [thread:$0]  %s22, 128, %s24, [#allocation3]
    $region5: #{tpu_custom_call.1} parent=1 // pred_fallthru
      _
    // Predicated region
    $region6: #{tpu_custom_call.1} parent=1 // pred_check
      _
    $region7: #{tpu_custom_call.1} parent=1 // pred_check_branch
      %28 = sbr.rel (0) target = $region9
    $region8: #{tpu_custom_call.1} parent=1 // pred_region
      %30 = vsyncadd [#allocation6], 0
      %s32 = sshll.u32 %s1, 4
      %s33 = int_to_ptr.hbm [resolvable:$true] %s32
      %s34 = sshll.u32 [#allocation5], 4
      %s35 = int_to_ptr.vmem [resolvable:$true] %s34
      %37 = dma.hbm_to_vmem [thread:$0]  %s33, 128, %s35, [#allocation6]
    $region9: #{tpu_custom_call.1} parent=1 // pred_fallthru
      _
    // Predicated region
    $region10: #{tpu_custom_call.1} parent=1 // pred_check
      _
    $region11: #{tpu_custom_call.1} parent=1 // pred_check_branch
      %39 = sbr.rel (0) target = $region13
    $region12: #{tpu_custom_call.1} parent=1 // pred_region
      _
    $region13: #{tpu_custom_call.1} parent=1 // pred_fallthru
      _
    // Predicated region
    $region14: #{tpu_custom_call.1} parent=1 // pred_check
      _
    $region15: #{tpu_custom_call.1} parent=1 // pred_check_branch
      %41 = sbr.rel (0) target = $region17
    $region16: #{tpu_custom_call.1} parent=1 // pred_region
      %43 = vsyncadd [#allocation6], 0
      %s44 = sshll.u32 %s3, 4
      %s45 = int_to_ptr.hbm [resolvable:$true] %s44
      %s46 = sshll.u32 [#allocation7], 4
      %s47 = int_to_ptr.vmem [resolvable:$true] %s46
      %52 = dma.hbm_to_vmem [thread:$0]  %s45, 4096, %s47, [#allocation6], 256, 256, 16
    $region17: #{tpu_custom_call.1} parent=1 // pred_fallthru
      _
    // Predicated region
    $region18: #{tpu_custom_call.1} parent=1 // pred_check
      _
    $region19: #{tpu_custom_call.1} parent=1 // pred_check_branch
      %54 = sbr.rel (0) target = $region21
    $region20: #{tpu_custom_call.1} parent=1 // pred_region
      _
    $region21: #{tpu_custom_call.1} parent=1 // pred_fallthru
      _
    // Predicated region
    $region22: #{tpu_custom_call.1} parent=1 // pred_check
      _
    $region23: #{tpu_custom_call.1} parent=1 // pred_check_branch
      %56 = sbr.rel (0) target = $region25
    $region24: #{tpu_custom_call.1} parent=1 // pred_region
      %58 = vsyncadd [#allocation9], 0
      %s59 = sshll.u32 %s5, 4
      %s60 = int_to_ptr.hbm [resolvable:$true] %s59
      %s61 = sshll.u32 [#allocation8], 4
      %s62 = int_to_ptr.vmem [resolvable:$true] %s61
      %67 = dma.hbm_to_vmem [thread:$0]  %s60, 4096, %s62, [#allocation9], 128, 128, 8
    $region25: #{tpu_custom_call.1} parent=1 // pred_fallthru
      _
    // Predicated region
    $region26: #{tpu_custom_call.1} parent=1 // pred_check
      _
    $region27: #{tpu_custom_call.1} parent=1 // pred_check_branch
      %69 = sbr.rel (0) target = $region29
    $region28: #{tpu_custom_call.1} parent=1 // pred_region
      _
    $region29: #{tpu_custom_call.1} parent=1 // pred_fallthru
      _
    // Predicated region
    $region30: #{tpu_custom_call.1} parent=1 // pred_check
      _
    $region31: #{tpu_custom_call.1} parent=1 // pred_check_branch
      %71 = sbr.rel (0) target = $region33
    $region32: #{tpu_custom_call.1} parent=1 // pred_region
      %73 = dma.done [#allocation3], 128
    $region33: #{tpu_custom_call.1} parent=1 // pred_fallthru
      _
    // Predicated region
    $region34: #{tpu_custom_call.1} parent=1 // pred_check
      _
    $region35: #{tpu_custom_call.1} parent=1 // pred_check_branch
      %75 = sbr.rel (0) target = $region37
    $region36: #{tpu_custom_call.1} parent=1 // pred_region
      %77 = dma.done [#allocation6], 128
    $region37: #{tpu_custom_call.1} parent=1 // pred_fallthru
      _
    // Predicated region
    $region38: #{tpu_custom_call.1} parent=1 // pred_check
      _
    $region39: #{tpu_custom_call.1} parent=1 // pred_check_branch
      %79 = sbr.rel (0) target = $region41
    $region40: #{tpu_custom_call.1} parent=1 // pred_region
      %81 = dma.done [#allocation6], 4096
    $region41: #{tpu_custom_call.1} parent=1 // pred_fallthru
      _
    // Predicated region
    $region42: #{tpu_custom_call.1} parent=1 // pred_check
      _
    $region43: #{tpu_custom_call.1} parent=1 // pred_check_branch
      %83 = sbr.rel (0) target = $region45
    $region44: #{tpu_custom_call.1} parent=1 // pred_region
      %85 = dma.done [#allocation9], 4096
    $region45: #{tpu_custom_call.1} parent=1 // pred_fallthru
      _
    %v86 = vld [vmem:[#allocation2] sm:$0xff]
    %v87 = vld [vmem:[#allocation5] sm:$0xff]
    %v88 = vld [vmem:[%s2] sm:$0x1]
    %v90 = vperm.slane %v88, 0
    %vm92 = vcmask 64512
    %v94 = vsel %vm92, %v86, 0
    %96 = vmatpush.msra.mxu0 0.0
    %97 = vmatpush.msra.mxu0 0.0
    %98 = vmatpush.msra.mxu0 0.0
    %99 = vmatpush.msra.mxu0 0.0
    %100 = vmatpush.msra.mxu0 0.0
    %101 = vmatpush.msra.mxu0 0.0
    %102 = vmatpush.msra.mxu0 0.0
    %103 = vmatpush.msra.mxu0 0.0
    %104 = vmatpush.msra.mxu0 0.0
    %105 = vmatpush.msra.mxu0 0.0
    %106 = vmatpush.msra.mxu0 0.0
    %107 = vmatpush.msra.mxu0 0.0
    %108 = vmatpush.msra.mxu0 0.0
    %109 = vmatpush.msra.mxu0 0.0
    %110 = vmatpush.msra.mxu0 0.0
    %111 = vmatpush.msra.mxu0 %v87
    %112 = vmatmul.f32.gmra.mxu0 %v94
    %v113 = vpop.f32.mrf.mxu0
    %v114 = vadd.f32 %v90, %v113
    %115 = vdwg.mxu0
    %v116 = vtanh.pop %v114
    %v117 = vld [vmem:[#allocation7] sm:$0xff]
    %v118 = vld [vmem:[#allocation7 + $0x8] sm:$0xff]
    %v119 = vld [vmem:[#allocation7 + $0x10] sm:$0xff]
    %v120 = vld [vmem:[#allocation7 + $0x18] sm:$0xff]
    %v121 = vld [vmem:[#allocation7 + $0x20] sm:$0xff]
    %v122 = vld [vmem:[#allocation7 + $0x28] sm:$0xff]
    %v123 = vld [vmem:[#allocation7 + $0x30] sm:$0xff]
    %v124 = vld [vmem:[#allocation7 + $0x38] sm:$0xff]
    %v125 = vld [vmem:[#allocation7 + $0x40] sm:$0xff]
    %v126 = vld [vmem:[#allocation7 + $0x48] sm:$0xff]
    %v127 = vld [vmem:[#allocation7 + $0x50] sm:$0xff]
    %v128 = vld [vmem:[#allocation7 + $0x58] sm:$0xff]
    %v129 = vld [vmem:[#allocation7 + $0x60] sm:$0xff]
    %v130 = vld [vmem:[#allocation7 + $0x68] sm:$0xff]
    %v131 = vld [vmem:[#allocation7 + $0x70] sm:$0xff]
    %v132 = vld [vmem:[#allocation7 + $0x78] sm:$0xff]
    %v133 = vld [vmem:[#allocation7 + $0x80] sm:$0xff]
    %v134 = vld [vmem:[#allocation7 + $0x88] sm:$0xff]
    %v135 = vld [vmem:[#allocation7 + $0x90] sm:$0xff]
    %v136 = vld [vmem:[#allocation7 + $0x98] sm:$0xff]
    %v137 = vld [vmem:[#allocation7 + $0xa0] sm:$0xff]
    %v138 = vld [vmem:[#allocation7 + $0xa8] sm:$0xff]
    %v139 = vld [vmem:[#allocation7 + $0xb0] sm:$0xff]
    %v140 = vld [vmem:[#allocation7 + $0xb8] sm:$0xff]
    %v141 = vld [vmem:[#allocation7 + $0xc0] sm:$0xff]
    %v142 = vld [vmem:[#allocation7 + $0xc8] sm:$0xff]
    %v143 = vld [vmem:[#allocation7 + $0xd0] sm:$0xff]
    %v144 = vld [vmem:[#allocation7 + $0xd8] sm:$0xff]
    %v145 = vld [vmem:[#allocation7 + $0xe0] sm:$0xff]
    %v146 = vld [vmem:[#allocation7 + $0xe8] sm:$0xff]
    %v147 = vld [vmem:[#allocation7 + $0xf0] sm:$0xff]
    %v148 = vld [vmem:[#allocation7 + $0xf8] sm:$0xff]
    %v149 = vld [vmem:[%s4] sm:$0x3]
    %v151 = vperm.slane %v149, 0
    %v152 = vperm.slane %v149, 1
    %155 = vmatpush.msra.mxu0 %v147
    %156 = vmatpush.msra.mxu0 %v145
    %157 = vmatpush.msra.mxu0 %v143
    %158 = vmatpush.msra.mxu0 %v141
    %159 = vmatpush.msra.mxu0 %v139
    %160 = vmatpush.msra.mxu0 %v137
    %161 = vmatpush.msra.mxu0 %v135
    %162 = vmatpush.msra.mxu0 %v133
    %163 = vmatpush.msra.mxu0 %v131
    %164 = vmatpush.msra.mxu0 %v129
    %165 = vmatpush.msra.mxu0 %v127
    %166 = vmatpush.msra.mxu0 %v125
    %167 = vmatpush.msra.mxu0 %v123
    %168 = vmatpush.msra.mxu0 %v121
    %169 = vmatpush.msra.mxu0 %v119
    %170 = vmatpush.msra.mxu0 %v117
    %171 = vmatmul.f32.gmra.mxu0 %v116
    %v172 = vpop.f32.mrf.mxu0
    %v173 = vadd.f32 %v151, %v172
    %174 = vdwg.mxu0
    %175 = vmatpush.msra.mxu0 %v148
    %176 = vmatpush.msra.mxu0 %v146
    %177 = vmatpush.msra.mxu0 %v144
    %178 = vmatpush.msra.mxu0 %v142
    %179 = vmatpush.msra.mxu0 %v140
    %180 = vmatpush.msra.mxu0 %v138
    %181 = vmatpush.msra.mxu0 %v136
    %182 = vmatpush.msra.mxu0 %v134
    %183 = vmatpush.msra.mxu0 %v132
    %184 = vmatpush.msra.mxu0 %v130
    %185 = vmatpush.msra.mxu0 %v128
    %186 = vmatpush.msra.mxu0 %v126
    %187 = vmatpush.msra.mxu0 %v124
    %188 = vmatpush.msra.mxu0 %v122
    %189 = vmatpush.msra.mxu0 %v120
    %190 = vmatpush.msra.mxu0 %v118
    %191 = vmatmul.f32.gmra.mxu0 %v116
    %v192 = vpop.f32.mrf.mxu0
    %v193 = vadd.f32 %v152, %v192
    %194 = vdwg.mxu0
    %v195 = vtanh.pop %v173
    %v196 = vtanh.pop %v193
    %v197 = vld [vmem:[#allocation8] sm:$0xff]
    %v198 = vld [vmem:[#allocation8 + $0x8] sm:$0xff]
    %v199 = vld [vmem:[#allocation8 + $0x10] sm:$0xff]
    %v200 = vld [vmem:[#allocation8 + $0x18] sm:$0xff]
    %v201 = vld [vmem:[#allocation8 + $0x20] sm:$0xff]
    %v202 = vld [vmem:[#allocation8 + $0x28] sm:$0xff]
    %v203 = vld [vmem:[#allocation8 + $0x30] sm:$0xff]
    %v204 = vld [vmem:[#allocation8 + $0x38] sm:$0xff]
    %v205 = vld [vmem:[#allocation8 + $0x40] sm:$0xff]
    %v206 = vld [vmem:[#allocation8 + $0x48] sm:$0xff]
    %v207 = vld [vmem:[#allocation8 + $0x50] sm:$0xff]
    %v208 = vld [vmem:[#allocation8 + $0x58] sm:$0xff]
    %v209 = vld [vmem:[#allocation8 + $0x60] sm:$0xff]
    %v210 = vld [vmem:[#allocation8 + $0x68] sm:$0xff]
    %v211 = vld [vmem:[#allocation8 + $0x70] sm:$0xff]
    %v212 = vld [vmem:[#allocation8 + $0x78] sm:$0xff]
    %v213 = vld [vmem:[#allocation8 + $0x80] sm:$0xff]
    %v214 = vld [vmem:[#allocation8 + $0x88] sm:$0xff]
    %v215 = vld [vmem:[#allocation8 + $0x90] sm:$0xff]
    %v216 = vld [vmem:[#allocation8 + $0x98] sm:$0xff]
    %v217 = vld [vmem:[#allocation8 + $0xa0] sm:$0xff]
    %v218 = vld [vmem:[#allocation8 + $0xa8] sm:$0xff]
    %v219 = vld [vmem:[#allocation8 + $0xb0] sm:$0xff]
    %v220 = vld [vmem:[#allocation8 + $0xb8] sm:$0xff]
    %v221 = vld [vmem:[#allocation8 + $0xc0] sm:$0xff]
    %v222 = vld [vmem:[#allocation8 + $0xc8] sm:$0xff]
    %v223 = vld [vmem:[#allocation8 + $0xd0] sm:$0xff]
    %v224 = vld [vmem:[#allocation8 + $0xd8] sm:$0xff]
    %v225 = vld [vmem:[#allocation8 + $0xe0] sm:$0xff]
    %v226 = vld [vmem:[#allocation8 + $0xe8] sm:$0xff]
    %v227 = vld [vmem:[#allocation8 + $0xf0] sm:$0xff]
    %v228 = vld [vmem:[#allocation8 + $0xf8] sm:$0xff]
    %v229 = vld [vmem:[%s6] sm:$0x1]
    %v231 = vperm.slane %v229, 0
    %233 = vmatpush.msra.mxu0 %v212
    %234 = vmatpush.msra.mxu0 %v211
    %235 = vmatpush.msra.mxu0 %v210
    %236 = vmatpush.msra.mxu0 %v209
    %237 = vmatpush.msra.mxu0 %v208
    %238 = vmatpush.msra.mxu0 %v207
    %239 = vmatpush.msra.mxu0 %v206
    %240 = vmatpush.msra.mxu0 %v205
    %241 = vmatpush.msra.mxu0 %v204
    %242 = vmatpush.msra.mxu0 %v203
    %243 = vmatpush.msra.mxu0 %v202
    %244 = vmatpush.msra.mxu0 %v201
    %245 = vmatpush.msra.mxu0 %v200
    %246 = vmatpush.msra.mxu0 %v199
    %247 = vmatpush.msra.mxu0 %v198
    %248 = vmatpush.msra.mxu0 %v197
    %249 = vmatmul.f32.gmra.mxu0 %v195
    %v250 = vpop.f32.mrf.mxu0
    %v251 = vadd.f32 %v231, %v250
    %252 = vdwg.mxu0
    %253 = vmatpush.msra.mxu0 %v228
    %254 = vmatpush.msra.mxu0 %v227
    %255 = vmatpush.msra.mxu0 %v226
    %256 = vmatpush.msra.mxu0 %v225
    %257 = vmatpush.msra.mxu0 %v224
    %258 = vmatpush.msra.mxu0 %v223
    %259 = vmatpush.msra.mxu0 %v222
    %260 = vmatpush.msra.mxu0 %v221
    %261 = vmatpush.msra.mxu0 %v220
    %262 = vmatpush.msra.mxu0 %v219
    %263 = vmatpush.msra.mxu0 %v218
    %264 = vmatpush.msra.mxu0 %v217
    %265 = vmatpush.msra.mxu0 %v216
    %266 = vmatpush.msra.mxu0 %v215
    %267 = vmatpush.msra.mxu0 %v214
    %268 = vmatpush.msra.mxu0 %v213
    %269 = vmatmul.f32.gmra.mxu0 %v196
    %v270 = vpop.f32.mrf.mxu0
    %v271 = vadd.f32 %v251, %v270
    %272 = vdwg.mxu0
    %273 = vst [vmem:[#allocation10] sm:$0xff] %v271
    // Predicated region
    $region46: #{tpu_custom_call.1} parent=1 // pred_check
      _
    $region47: #{tpu_custom_call.1} parent=1 // pred_check_branch
      %275 = sbr.rel (0) target = $region49
    $region48: #{tpu_custom_call.1} parent=1 // pred_region
      %277 = vsyncadd [#allocation4], 0
      %s279 = sshll.u32 [#allocation10], 4
      %s280 = int_to_ptr.vmem [resolvable:$true] %s279
      %s281 = sshll.u32 %s7, 4
      %s282 = int_to_ptr.hbm [resolvable:$true] %s281
      %284 = dma.vmem_to_hbm [thread:$0]  %s280, 128, %s282, [#allocation4]
    $region49: #{tpu_custom_call.1} parent=1 // pred_fallthru
      _
    // Predicated region
    $region50: #{tpu_custom_call.1} parent=1 // pred_check
      _
    $region51: #{tpu_custom_call.1} parent=1 // pred_check_branch
      %286 = sbr.rel (0) target = $region53
    $region52: #{tpu_custom_call.1} parent=1 // pred_region
      %288 = dma.done [#allocation4], 128
    $region53: #{tpu_custom_call.1} parent=1 // pred_fallthru
      _
    %289 = vsyncpa [#allocation3], 1
    %290 = vsyncpa [#allocation6], 1
    %291 = vsyncpa [#allocation9], 1
    %292 = vsyncpa [#allocation4], 1

</llo_original>
